<compile_context>
chip_gen: v7x
topology: tpu7x:2x2x1
jax: 0.10.0
libtpu: 0.0.40
codegen_flags: <defaults>
</compile_context>

<pallas_src>
import jax
import jax.numpy as jnp
from jax import lax
from jax.experimental import pallas as pl
from jax.experimental.pallas import tpu as pltpu


# ---------------------------------------------------------------------------
# Kernel bodies
# ---------------------------------------------------------------------------

def _small_batched_kernel(x1_ref, x2_ref, o_ref):
    # x1_ref: (bt, K, M), x2_ref: (bt, K, N) -> o_ref: (bt, M, N)
    o_ref[...] = lax.dot_general(
        x1_ref[...], x2_ref[...],
        dimension_numbers=(((1,), (1,)), ((0,), (0,))),   # contract K, batch b
        preferred_element_type=jnp.float32,
    ).astype(o_ref.dtype)


def _bmm_full_k_kernel(x1_ref, x2_ref, o_ref):
    # x1_ref: (1, K, tm)  K-major LHS (no in-kernel transpose needed)
    # x2_ref: (1, K, tn), o_ref: (1, tm, tn)
    o_ref[0] = lax.dot_general(
        x1_ref[0], x2_ref[0],
        dimension_numbers=(((0,), (0,)), ((), ())),        # contract over K
        preferred_element_type=jnp.float32,
    ).astype(o_ref.dtype)


def _bmm_kred_acc_kernel(x1_ref, x2_ref, o_ref, acc_ref):
    # K-reduction grid axis; f32 VMEM accumulator; used for non-f32 outputs.
    k = pl.program_id(3)

    @pl.when(k == 0)
    def _():
        acc_ref[...] = jnp.zeros_like(acc_ref)

    acc_ref[...] += lax.dot_general(
        x1_ref[0], x2_ref[0],
        dimension_numbers=(((0,), (0,)), ((), ())),
        preferred_element_type=jnp.float32,
    )

    @pl.when(k == pl.num_programs(3) - 1)
    def _():
        o_ref[0] = acc_ref[...].astype(o_ref.dtype)


def _bmm_kred_f32_kernel(x1_ref, x2_ref, o_ref):
    # f32 output: the output block is resident across k, accumulate in place
    # (saves tm*tn*4 bytes of scratch VMEM and the finalize copy).
    k = pl.program_id(3)

    @pl.when(k == 0)
    def _():
        o_ref[...] = jnp.zeros_like(o_ref)

    o_ref[0] += lax.dot_general(
        x1_ref[0], x2_ref[0],
        dimension_numbers=(((0,), (0,)), ((), ())),
        preferred_element_type=jnp.float32,
    )


# ---------------------------------------------------------------------------
# Wrapper helpers
# ---------------------------------------------------------------------------

_BLOCK_BUDGET = 28 << 20      # target for the pipelined block footprint
_VMEM_LIMIT_CAP = 48 << 20    # stay well under v7x's 64 MiB physical VMEM


def _largest_divisor_leq(n, cap):
    cap = max(1, min(n, cap))
    for d in range(cap, 0, -1):
        if n % d == 0:
            return d
    return 1


def _round_up(x, m):
    return ((x + m - 1) // m) * m


def _vmem_limit(block_bytes):
    return int(min(max(int(block_bytes * 1.25) + (4 << 20), 24 << 20),
                   _VMEM_LIMIT_CAP))


# ---------------------------------------------------------------------------
# Public entry point
# ---------------------------------------------------------------------------

def bmm_transpose_first(x1, x2):
    """Computes jnp.einsum('bkm,bkn->bmn', x1, x2) with Pallas TPU kernels."""
    B, K, M = x1.shape
    B2, K2, N = x2.shape
    assert B == B2 and K == K2, "batch / contraction dims must match"

    out_dtype = jnp.result_type(x1.dtype, x2.dtype)
    isz1 = jnp.dtype(x1.dtype).itemsize
    isz2 = jnp.dtype(x2.dtype).itemsize
    osz = jnp.dtype(out_dtype).itemsize

    cost = pl.CostEstimate(
        flops=2 * B * M * N * K,
        transcendentals=0,
        bytes_accessed=x1.size * isz1 + x2.size * isz2 + B * M * N * osz,
    )

    per_batch_bytes = K * M * isz1 + K * N * isz2 + M * N * osz

    # ---------------- small-matrix path: fold batches per grid step ---------
    if per_batch_bytes <= 256 * 1024:
        fold_budget = 12 << 20                       # double-buffered blocks
        bt_cap = max(1, fold_budget // max(1, 2 * per_batch_bytes))
        bt = _largest_divisor_leq(B, min(bt_cap, 128))
        # keep >= 2 grid steps where possible so v7x megacore sharding engages
        if B // bt == 1 and bt >= 2 and bt % 2 == 0:
            bt //= 2
        block_bytes = 2 * bt * per_batch_bytes
        return pl.pallas_call(
            _small_batched_kernel,
            out_shape=jax.ShapeDtypeStruct((B, M, N), out_dtype),
            grid_spec=pltpu.PrefetchScalarGridSpec(
                num_scalar_prefetch=0,
                grid=(B // bt,),
                in_specs=[
                    pl.BlockSpec((bt, K, M), lambda g: (g, 0, 0)),
                    pl.BlockSpec((bt, K, N), lambda g: (g, 0, 0)),
                ],
                out_specs=pl.BlockSpec((bt, M, N), lambda g: (g, 0, 0)),
            ),
            compiler_params=pltpu.CompilerParams(
                dimension_semantics=("parallel",),
                vmem_limit_bytes=_vmem_limit(block_bytes),
            ),
            cost_estimate=cost,
        )(x1, x2)

    # ---------------- general tiled path ------------------------------------
    # Pad M / N to lane-aligned multiples of 128 so the full-dimension
    # fallback can never blow scoped VMEM and output stores stay lane-dense.
    Mp = _round_up(M, 128)
    Np = _round_up(N, 128)
    if Mp != M:
        x1 = jnp.pad(x1, ((0, 0), (0, 0), (0, Mp - M)))
    if Np != N:
        x2 = jnp.pad(x2, ((0, 0), (0, 0), (0, Np - N)))
    padded = (Mp != M) or (Np != N)

    tile_cands = (1024, 512, 256, 128)
    tm_cands = [t for t in tile_cands if t <= Mp and Mp % t == 0] or [Mp]
    tn_cands = [t for t in tile_cands if t <= Np and Np % t == 0] or [Np]

    # --- Preferred schedule: no K grid axis, full-K stripes, LHS resident
    #     across the innermost N loop (its index_map ignores j).
    best_a = None
    for tm_c in tm_cands:
        for tn_c in tn_cands:
            foot = (2 * K * tm_c * isz1 + 2 * K * tn_c * isz2
                    + 2 * tm_c * tn_c * osz)
            if foot <= _BLOCK_BUDGET:
                score = tm_c * tn_c
                if best_a is None or score > best_a[0]:
                    best_a = (score, tm_c, tn_c, foot)

    if best_a is not None:
        _, tm, tn, foot = best_a
        # v7x megacore: avoid a 1-point parallel grid.
        if B * (Mp // tm) * (Np // tn) == 1:
            if tn >= 256:
                tn //= 2
            elif tm >= 256:
                tm //= 2
        grid = (B, Mp // tm, Np // tn)
        out = pl.pallas_call(
            _bmm_full_k_kernel,
            out_shape=jax.ShapeDtypeStruct((B, Mp, Np), out_dtype),
            grid_spec=pltpu.PrefetchScalarGridSpec(
                num_scalar_prefetch=0,
                grid=grid,
                in_specs=[
                    # LHS ignores j: fetched once per (b, i), reused over N.
                    pl.BlockSpec((1, K, tm), lambda b, i, j: (b, 0, i)),
                    pl.BlockSpec((1, K, tn), lambda b, i, j: (b, 0, j)),
                ],
                out_specs=pl.BlockSpec((1, tm, tn), lambda b, i, j: (b, i, j)),
            ),
            compiler_params=pltpu.CompilerParams(
                dimension_semantics=("parallel", "parallel", "parallel"),
                vmem_limit_bytes=_vmem_limit(foot),
            ),
            cost_estimate=cost,
        )(x1, x2)
        return out[:, :M, :N] if padded else out

    # --- Fallback for very large K: K-reduction grid axis. -------------------
    min_pack = max(8, 32 // max(1, min(isz1, isz2)))   # f32:8, bf16:16, int8:32
    tk_cands = [t for t in (2048, 1024, 512, 256, 128, 64, 32, 16)
                if t >= min_pack and t % min_pack == 0 and t <= K and K % t == 0]
    if not tk_cands:
        tk_cands = [K]                                 # full-dim block is legal

    direct_f32 = jnp.dtype(out_dtype) == jnp.dtype(jnp.float32)

    best_b = None
    for tm_c in tm_cands:
        for tn_c in tn_cands:
            out_bytes = 2 * tm_c * tn_c * osz + (0 if direct_f32
                                                 else tm_c * tn_c * 4)
            rem = _BLOCK_BUDGET - out_bytes
            if rem <= 0:
                continue
            for tk_c in tk_cands:                      # descending
                in_bytes_blk = 2 * tk_c * (tm_c * isz1 + tn_c * isz2)
                if in_bytes_blk <= rem:
                    score = (tm_c * tn_c, tk_c)
                    if best_b is None or score > best_b[0]:
                        best_b = (score, tm_c, tn_c, tk_c,
                                  out_bytes + in_bytes_blk)
                    break
    if best_b is None:
        tm, tn, tk = 128, 128, tk_cands[-1]
        foot = (2 * tk * (tm * isz1 + tn * isz2) + 2 * tm * tn * osz
                + tm * tn * 4)
    else:
        _, tm, tn, tk, foot = best_b

    # v7x megacore: avoid a 1-point parallel grid.
    if B * (Mp // tm) * (Np // tn) == 1:
        if tn >= 256:
            tn //= 2
        elif tm >= 256:
            tm //= 2

    grid = (B, Mp // tm, Np // tn, K // tk)
    if direct_f32:
        kernel = _bmm_kred_f32_kernel
        scratch = []
    else:
        kernel = _bmm_kred_acc_kernel
        scratch = [pltpu.VMEM((tm, tn), jnp.float32)]

    out = pl.pallas_call(
        kernel,
        out_shape=jax.ShapeDtypeStruct((B, Mp, Np), out_dtype),
        grid_spec=pltpu.PrefetchScalarGridSpec(
            num_scalar_prefetch=0,
            grid=grid,
            in_specs=[
                pl.BlockSpec((1, tk, tm), lambda b, i, j, k: (b, k, i)),
                pl.BlockSpec((1, tk, tn), lambda b, i, j, k: (b, k, j)),
            ],
            out_specs=pl.BlockSpec((1, tm, tn), lambda b, i, j, k: (b, i, j)),
            scratch_shapes=scratch,
        ),
        compiler_params=pltpu.CompilerParams(
            dimension_semantics=("parallel", "parallel", "parallel",
                                 "arbitrary"),
            vmem_limit_bytes=_vmem_limit(foot),
        ),
        cost_estimate=cost,
    )(x1, x2)
    return out[:, :M, :N] if padded else out


# ---------------------------------------------------------------------------
# Self-test
# ---------------------------------------------------------------------------

if __name__ == "__main__":
    # TODO(synk): `conditional_func` is undefined in the reference module;
    # only the bmm(x1.permute(0,2,1), x2) branch is implemented.
    keys = jax.random.split(jax.random.PRNGKey(0), 10)

    def ref_bmm(a, b):
        return jnp.einsum("bkm,bkn->bmn",
                          a.astype(jnp.float32), b.astype(jnp.float32),
                          precision="highest")

    # 1) tiny shapes consistent with the module -> small batch-folded path
    B, K, M, N = 2, 8, 16, 32
    x1 = jax.random.normal(keys[0], (B, K, M), dtype=jnp.float32)
    x2 = jax.random.normal(keys[1], (B, K, N), dtype=jnp.float32)
    out = jax.block_until_ready(bmm_transpose_first(x1, x2))
    assert out.shape == (B, M, N)
    assert jnp.allclose(out, ref_bmm(x1, x2), atol=1e-4, rtol=1e-4)

    # 2) general path (full-K resident-LHS schedule), bf16
    B, K, M, N = 2, 256, 256, 384
    y1 = jax.random.normal(keys[2], (B, K, M), jnp.float32).astype(jnp.bfloat16)
    y2 = jax.random.normal(keys[3], (B, K, N), jnp.float32).astype(jnp.bfloat16)
    out = jax.block_until_ready(bmm_transpose_first(y1, y2))
    assert out.shape == (B, M, N)
    assert jnp.allclose(out.astype(jnp.float32), ref_bmm(y1, y2),
                        atol=1e-1, rtol=2e-2)

    # 3) general path with non-128-divisible M, N (padding + slice), f32
    B, K, M, N = 2, 512, 200, 200
    z1 = jax.random.normal(keys[4], (B, K, M), dtype=jnp.float32)
    z2 = jax.random.normal(keys[5], (B, K, N), dtype=jnp.float32)
    out = jax.block_until_ready(bmm_transpose_first(z1, z2))
    assert out.shape == (B, M, N)
    assert jnp.allclose(out, ref_bmm(z1, z2), atol=2e-1, rtol=1e-2)

    # 4) very large K -> K-reduction path with f32 scratch accumulator (bf16)
    B, K, M, N = 1, 32768, 256, 256
    w1 = jax.random.normal(keys[6], (B, K, M), jnp.float32).astype(jnp.bfloat16)
    w2 = jax.random.normal(keys[7], (B, K, N), jnp.float32).astype(jnp.bfloat16)
    out = jax.block_until_ready(bmm_transpose_first(w1, w2))
    assert out.shape == (B, M, N)
    assert jnp.allclose(out.astype(jnp.float32), ref_bmm(w1, w2),
                        atol=2.0, rtol=2e-2)

    # 5) very large K -> K-reduction path accumulating directly in o_ref (f32)
    B, K, M, N = 1, 16384, 256, 256
    v1 = jax.random.normal(keys[8], (B, K, M), dtype=jnp.float32)
    v2 = jax.random.normal(keys[9], (B, K, N), dtype=jnp.float32)
    out = jax.block_until_ready(bmm_transpose_first(v1, v2))
    assert out.shape == (B, M, N)
    assert jnp.allclose(out, ref_bmm(v1, v2), atol=1.0, rtol=1e-2)

    print("KERNEL_OK")
</pallas_src>

<mosaic_0001>
module attributes {stable_mosaic.version = 11 : i64} {
  func.func @_small_batched_kernel(%arg0: i32, %arg1: memref<1x8x16xf32, #tpu.memory_space<vmem>>, %arg2: memref<1x8x32xf32, #tpu.memory_space<vmem>>, %arg3: memref<1x16x32xf32, #tpu.memory_space<vmem>>) attributes {dimension_semantics = [#tpu.dimension_semantics<parallel>], iteration_bounds = array<i64: 2>, scalar_prefetch = 0 : i64, scratch_operands = 0 : i64, tpu.core_type = #tpu.core_type<tc>, window_params = [{transform_indices = @transform_0, window_bounds = array<i64: 1, 8, 16>}, {transform_indices = @transform_1, window_bounds = array<i64: 1, 8, 32>}, {transform_indices = @transform_2, window_bounds = array<i64: 1, 16, 32>}]} {
    %c0 = arith.constant 0 : index
    %c0_0 = arith.constant 0 : index
    %c0_1 = arith.constant 0 : index
    %0 = vector.load %arg1[%c0, %c0_0, %c0_1] : memref<1x8x16xf32, #tpu.memory_space<vmem>>, vector<1x8x16xf32>
    %c0_2 = arith.constant 0 : index
    %c0_3 = arith.constant 0 : index
    %c0_4 = arith.constant 0 : index
    %1 = vector.load %arg2[%c0_2, %c0_3, %c0_4] : memref<1x8x32xf32, #tpu.memory_space<vmem>>, vector<1x8x32xf32>
    %cst = arith.constant dense<0.000000e+00> : vector<1x16x32xf32>
    %2 = tpu.matmul %0, %1, %cst {dimension_numbers = #tpu.dot_dimension_numbers<[1], [1], [2], [2], [0, 0, 0, 2, 1, 2], [0], [0]>} : vector<1x8x16xf32>, vector<1x8x32xf32>, vector<1x16x32xf32> -> vector<1x16x32xf32>
    %c0_5 = arith.constant 0 : index
    %c0_6 = arith.constant 0 : index
    %c0_7 = arith.constant 0 : index
    %3 = vector.load %arg3[%c0_5, %c0_6, %c0_7] : memref<1x16x32xf32, #tpu.memory_space<vmem>>, vector<1x16x32xf32>
    tpu.vector_store %arg3[%c0_5, %c0_6, %c0_7], %2 {strides = array<i32>} : memref<1x16x32xf32, #tpu.memory_space<vmem>>, vector<1x16x32xf32>,
    return
  }
  func.func @transform_0(%arg0: i32) -> (i32, i32, i32) {
    %c0_i32 = arith.constant 0 : i32
    %c0_i32_0 = arith.constant 0 : i32
    %c0_i32_1 = arith.constant 0 : i32
    return %arg0, %c0_i32, %c0_i32_0 : i32, i32, i32
  }
  func.func @transform_1(%arg0: i32) -> (i32, i32, i32) {
    %c0_i32 = arith.constant 0 : i32
    %c0_i32_0 = arith.constant 0 : i32
    %c0_i32_1 = arith.constant 0 : i32
    return %arg0, %c0_i32, %c0_i32_0 : i32, i32, i32
  }
  func.func @transform_2(%arg0: i32) -> (i32, i32, i32) {
    %c0_i32 = arith.constant 0 : i32
    %c0_i32_0 = arith.constant 0 : i32
    %c0_i32_1 = arith.constant 0 : i32
    return %arg0, %c0_i32, %c0_i32_0 : i32, i32, i32
  }
}

</mosaic_0001>

<llo_original>
// kernel: tpu_custom_call.1
$region0: #{tpu_custom_call.1}
  #allocation0 [shape = 'u32[]', space=smem, size = 0x4, offset = 0x4, fixed_abs, tag = 'smem constant byte address 0x4 - core index']
  #allocation1 [shape = 'u32[144,128]{1,0:T(1,128)}', space=vmem, size = 0x12000, scoped, tag = 'internal scratch']
  %s0 = inlined_call_operand.hbm [shape: f32[2,8,16], index: 0, kind: input, shape index: {}]
  %s1 = inlined_call_operand.hbm [shape: f32[2,8,32], index: 1, kind: input, shape index: {}]
  %s2 = inlined_call_operand.hbm [shape: f32[2,16,32], index: 2, kind: output, shape index: {}]
  %s3 = sld [smem:[#allocation0]]
  $region49: #{tpu_custom_call.1} parent=0
    _
  %s5 = ssub.s32 1, %s3
  %s6 = scalar_select 0, %s5, %s3
  $region1: #{tpu_custom_call.1} parent=0
    #allocation2 [shape = 'u8[8192]{0}', space=vmem, size = 0x2000, scoped, tag = 'input window, operand 0']
    #allocation3 [shape = 's32[2]{0}', space=sflag, size = 0x8, scoped, tag = 'scoped memory for tpu_custom_call.1']
    #allocation4 [shape = 's32[2]{0}', space=sflag, size = 0x8, scoped, tag = 'scoped memory for tpu_custom_call.1']
    #allocation5 [shape = 'u8[8192]{0}', space=vmem, size = 0x2000, scoped, tag = 'input window, operand 1']
    #allocation6 [shape = 's32[2]{0}', space=sflag, size = 0x8, scoped, tag = 'scoped memory for tpu_custom_call.1']
    #allocation7 [shape = 'u8[16384]{0}', space=vmem, size = 0x4000, scoped, tag = 'output window, operand 0']
    %7 = vsyncpa [#allocation3], 0
    %s8 = scalar_lea.sflag [#allocation3], 1
    %9 = vsyncpa %s8, 0
    %10 = vsyncpa [#allocation6], 0
    %s11 = scalar_lea.sflag [#allocation6], 1
    %12 = vsyncpa %s11, 0
    %13 = vsyncpa [#allocation4], 0
    %s14 = scalar_lea.sflag [#allocation4], 1
    %15 = vsyncpa %s14, 0
    loop: start=0, step=1, limit=4
    $region2: #{tpu_custom_call.1} parent=1 // loop_pre_header
      _
    $region3: #{tpu_custom_call.1} parent=1 // loop_header
      %s17 = sphi 0, %s21
      %p18 = scmp.ge.s32.totalorder %s17, 4
      %s27 = sphi 0, %s29
      %s30 = sphi 0, %s27
      %s31 = sphi 0, %s30
      %s47 = sphi 0, %s31
      %s53 = sphi 0, %s55
      %s56 = sphi 0, %s53
      %s57 = sphi 0, %s56
      %s73 = sphi 0, %s57
      %s79 = sphi 0, %s81
      %s82 = sphi 0, %s79
      %s83 = sphi 0, %s82
      %s99 = sphi 0, %s83
    $region4: #{tpu_custom_call.1} parent=1 // loop_header_branch
      %20 = sbr.rel (%p18) target = $region8
    $region5: #{tpu_custom_call.1} parent=1 // loop_body
      %s22 = ssub.s32 %s17, 1
      %s23 = ssub.s32 %s17, 2
      %s24 = sadd.s32 %s17, 1
      %s25 = ssub.s32 %s17, %s24
      %p26 = scmp.eq.s32.totalorder %s25, 0
      %s28 = sadd.s32 %s27, 1
      %s29 = scalar_select %p26, %s27, %s28
      %p32 = pneg %p26
      %p33 = scmp.eq.s32.totalorder %s17, 1
      %p34 = por %p32, %p33
      %p35 = scmp.ne.s32.totalorder %s27, %s30
      %p36 = scmp.eq.s32.totalorder %s17, 0
      %p37 = por %p35, %p36
      %p38 = scmp.ne.s32.totalorder %s27, %s30
      %p39 = scmp.eq.s32.totalorder %s22, 1
      %p40 = por %p38, %p39
      %p41 = scmp.ne.s32.totalorder %s30, %s31
      %p42 = scmp.eq.s32.totalorder %s22, 0
      %p43 = por %p41, %p42
      %p44 = scmp.ne.s32.totalorder %s30, %s31
      %p45 = scmp.eq.s32.totalorder %s23, 1
      %p46 = por %p44, %p45
      %p48 = scmp.ne.s32.totalorder %s31, %s47
      %p49 = scmp.eq.s32.totalorder %s23, 0
      %p50 = por %p48, %p49
      %s51 = ssub.s32 %s17, %s24
      %p52 = scmp.eq.s32.totalorder %s51, 0
      %s54 = sadd.s32 %s53, 1
      %s55 = scalar_select %p52, %s53, %s54
      %p58 = pneg %p52
      %p59 = scmp.eq.s32.totalorder %s17, 1
      %p60 = por %p58, %p59
      %p61 = scmp.ne.s32.totalorder %s53, %s56
      %p62 = scmp.eq.s32.totalorder %s17, 0
      %p63 = por %p61, %p62
      %p64 = scmp.ne.s32.totalorder %s53, %s56
      %p65 = scmp.eq.s32.totalorder %s22, 1
      %p66 = por %p64, %p65
      %p67 = scmp.ne.s32.totalorder %s56, %s57
      %p68 = scmp.eq.s32.totalorder %s22, 0
      %p69 = por %p67, %p68
      %p70 = scmp.ne.s32.totalorder %s56, %s57
      %p71 = scmp.eq.s32.totalorder %s23, 1
      %p72 = por %p70, %p71
      %p74 = scmp.ne.s32.totalorder %s57, %s73
      %p75 = scmp.eq.s32.totalorder %s23, 0
      %p76 = por %p74, %p75
      %s77 = ssub.s32 %s17, %s24
      %p78 = scmp.eq.s32.totalorder %s77, 0
      %s80 = sadd.s32 %s79, 1
      %s81 = scalar_select %p78, %s79, %s80
      %p84 = pneg %p78
      %p85 = scmp.eq.s32.totalorder %s17, 1
      %p86 = por %p84, %p85
      %p87 = scmp.ne.s32.totalorder %s79, %s82
      %p88 = scmp.eq.s32.totalorder %s17, 0
      %p89 = por %p87, %p88
      %p90 = scmp.ne.s32.totalorder %s79, %s82
      %p91 = scmp.eq.s32.totalorder %s22, 1
      %p92 = por %p90, %p91
      %p93 = scmp.ne.s32.totalorder %s82, %s83
      %p94 = scmp.eq.s32.totalorder %s22, 0
      %p95 = por %p93, %p94
      %p96 = scmp.ne.s32.totalorder %s82, %s83
      %p97 = scmp.eq.s32.totalorder %s23, 1
      %p98 = por %p96, %p97
      %p100 = scmp.ne.s32.totalorder %s83, %s99
      %p101 = scmp.eq.s32.totalorder %s23, 0
      %p102 = por %p100, %p101
      %p103 = scmp.le.s32.totalorder 1, %s17
      %p104 = scmp.lt.s32.totalorder %s17, 3
      %p105 = pnand %p103, %p104
      %p106 = pneg %p105
      // Predicated region
      $region9: #{tpu_custom_call.1} parent=5 // pred_check
        _
      $region10: #{tpu_custom_call.1} parent=5 // pred_check_branch
        %108 = sbr.rel (%p105) target = $region12
      $region11: #{tpu_custom_call.1} parent=5 // pred_region
        %s109 = ssub.s32 %s17, 1
      $region12: #{tpu_custom_call.1} parent=5 // pred_fallthru
        _
      %p110 = scmp.lt.s32.totalorder %s17, 2
      // Predicated region
      $region13: #{tpu_custom_call.1} parent=5 // pred_check
        %p111 = pneg %p110
      $region14: #{tpu_custom_call.1} parent=5 // pred_check_branch
        %113 = sbr.rel (%p111) target = $region16
      $region15: #{tpu_custom_call.1} parent=5 // pred_region
        // Predicated region
        $region17: #{tpu_custom_call.1} parent=15 // pred_check
          %p114 = pneg %p37
        $region18: #{tpu_custom_call.1} parent=15 // pred_check_branch
          %116 = sbr.rel (%p114) target = $region20
        $region19: #{tpu_custom_call.1} parent=15 // pred_region
          %s117 = sand.u32 %s27, 1
          %s118 = scalar_lea.sflag [#allocation3], %s117
          %s119 = sand.u32 %s27, 1
          %s120 = smul.addr %s119, 8
          %s121 = scalar_lea.vmem [#allocation2], %s120
          %s123 = ssub.s32 128, 128
          %124 = vsyncadd %s118, %s123
          %s125 = smul.addr %s17, 128
          %s126 = scalar_lea.hbm %s0, %s125
          %s128 = sshll.u32 %s121, 4
          %s129 = int_to_ptr.vmem [resolvable:$true] %s128
          %131 = dma.hbm_to_vmem [thread:$0]  %s126, 128, %s129, %s118
        $region20: #{tpu_custom_call.1} parent=15 // pred_fallthru
          _
        // Predicated region
        $region21: #{tpu_custom_call.1} parent=15 // pred_check
          %p132 = pneg %p63
        $region22: #{tpu_custom_call.1} parent=15 // pred_check_branch
          %134 = sbr.rel (%p132) target = $region24
        $region23: #{tpu_custom_call.1} parent=15 // pred_region
          %s135 = sand.u32 %s53, 1
          %s136 = scalar_lea.sflag [#allocation6], %s135
          %s137 = sand.u32 %s53, 1
          %s138 = smul.addr %s137, 8
          %s139 = scalar_lea.vmem [#allocation5], %s138
          %s141 = ssub.s32 128, 128
          %142 = vsyncadd %s136, %s141
          %s143 = smul.addr %s17, 128
          %s144 = scalar_lea.hbm %s1, %s143
          %s146 = sshll.u32 %s139, 4
          %s147 = int_to_ptr.vmem [resolvable:$true] %s146
          %149 = dma.hbm_to_vmem [thread:$0]  %s144, 128, %s147, %s136
        $region24: #{tpu_custom_call.1} parent=15 // pred_fallthru
          _
      $region16: #{tpu_custom_call.1} parent=5 // pred_fallthru
        _
      %p150 = scmp.le.s32.totalorder 1, %s17
      %p151 = scmp.lt.s32.totalorder %s17, 3
      %p152 = pnand %p150, %p151
      %p153 = pneg %p152
      // Predicated region
      $region25: #{tpu_custom_call.1} parent=5 // pred_check
        _
      $region26: #{tpu_custom_call.1} parent=5 // pred_check_branch
        %155 = sbr.rel (%p152) target = $region28
      $region27: #{tpu_custom_call.1} parent=5 // pred_region
        %s156 = ssub.s32 %s17, 1
        %s157 = sand.u32 %s30, 1
        %s158 = scalar_lea.sflag [#allocation3], %s157
        %s159 = sand.u32 %s30, 1
        %s160 = smul.addr %s159, 8
        %s161 = scalar_lea.vmem [#allocation2], %s160
        // Predicated region
        $region29: #{tpu_custom_call.1} parent=27 // pred_check
          %p162 = pneg %p43
        $region30: #{tpu_custom_call.1} parent=27 // pred_check_branch
          %164 = sbr.rel (%p162) target = $region32
        $region31: #{tpu_custom_call.1} parent=27 // pred_region
          %165 = dma.done %s158, 128
        $region32: #{tpu_custom_call.1} parent=27 // pred_fallthru
          _
        %s166 = sand.u32 %s56, 1
        %s167 = scalar_lea.sflag [#allocation6], %s166
        %s168 = sand.u32 %s56, 1
        %s169 = smul.addr %s168, 8
        %s170 = scalar_lea.vmem [#allocation5], %s169
        // Predicated region
        $region33: #{tpu_custom_call.1} parent=27 // pred_check
          %p171 = pneg %p69
        $region34: #{tpu_custom_call.1} parent=27 // pred_check_branch
          %173 = sbr.rel (%p171) target = $region36
        $region35: #{tpu_custom_call.1} parent=27 // pred_region
          %174 = dma.done %s167, 128
        $region36: #{tpu_custom_call.1} parent=27 // pred_fallthru
          _
        %s175 = sand.u32 %s30, 1
        %s176 = scalar_lea.sflag [#allocation3], %s175
        %s177 = sand.u32 %s30, 1
        %s178 = smul.addr %s177, 8
        %s179 = scalar_lea.vmem [#allocation2], %s178
        %p180 = pneg %p43
        %p181 = pneg %p40
        %s182 = sand.u32 %s56, 1
        %s183 = scalar_lea.sflag [#allocation6], %s182
        %s184 = sand.u32 %s56, 1
        %s185 = smul.addr %s184, 8
        %s186 = scalar_lea.vmem [#allocation5], %s185
        %p187 = pneg %p69
        %p188 = pneg %p66
        %p189 = pneg %p95
        %p190 = pneg %p92
        %s191 = sand.u32 %s82, 1
        %s192 = scalar_lea.sflag [#allocation4], %s191
        %s193 = sand.u32 %s82, 1
        %s194 = smul.addr %s193, 16
        %s195 = scalar_lea.vmem [#allocation7], %s194
        %v196 = vld [vmem:[%s161] sm:$0xff]
        %v197 = vld [vmem:[%s170] sm:$0xff]
        %198 = vxpose.xlu0.b32.start [1/16] %v196, 128
        %199 = vxpose.xlu0.b32.cont [2/16] 0.0, 128
        %200 = vxpose.xlu0.b32.cont [3/16] 0.0, 128
        %201 = vxpose.xlu0.b32.cont [4/16] 0.0, 128
        %202 = vxpose.xlu0.b32.cont [5/16] 0.0, 128
        %203 = vxpose.xlu0.b32.cont [6/16] 0.0, 128
        %204 = vxpose.xlu0.b32.cont [7/16] 0.0, 128
        %205 = vxpose.xlu0.b32.cont [8/16] 0.0, 128
        %206 = vxpose.xlu0.b32.cont [9/16] 0.0, 128
        %207 = vxpose.xlu0.b32.cont [10/16] 0.0, 128
        %208 = vxpose.xlu0.b32.cont [11/16] 0.0, 128
        %209 = vxpose.xlu0.b32.cont [12/16] 0.0, 128
        %210 = vxpose.xlu0.b32.cont [13/16] 0.0, 128
        %211 = vxpose.xlu0.b32.cont [14/16] 0.0, 128
        %212 = vxpose.xlu0.b32.cont [15/16] 0.0, 128
        %213 = vxpose.xlu0.b32.end [16/16] 0.0, 128
        %v214 = vpop.trf.xlu0
        %v215 = vpop.trf.xlu0
        %v216 = vpop.trf.xlu0
        %v217 = vpop.trf.xlu0
        %v218 = vpop.trf.xlu0
        %v219 = vpop.trf.xlu0
        %v220 = vpop.trf.xlu0
        %v221 = vpop.trf.xlu0
        %v222 = vpop.trf.xlu0
        %v223 = vpop.trf.xlu0
        %v224 = vpop.trf.xlu0
        %v225 = vpop.trf.xlu0
        %v226 = vpop.trf.xlu0
        %v227 = vpop.trf.xlu0
        %v228 = vpop.trf.xlu0
        %v229 = vpop.trf.xlu0
        %vm230 = vcmask 64512
        %v232 = vsel %vm230, %v214, 0
        %v235 = vsel %vm230, %v215, 0
        %237 = vmatprep.subr.mxu0 0.0
        %238 = vmatpush1.msra.mxu0 %v197
        %239 = vmatprep.subr.mxu0 0.0
        %240 = vmatpush1.msra.mxu0 0.0
        %241 = vmatprep.subr.mxu0 0.0
        %242 = vmatpush1.msra.mxu0 0.0
        %243 = vmatprep.subr.mxu0 0.0
        %244 = vmatpush1.msra.mxu0 0.0
        %245 = vmatprep.subr.mxu0 0.0
        %246 = vmatpush1.msra.mxu0 0.0
        %247 = vmatprep.subr.mxu0 0.0
        %248 = vmatpush1.msra.mxu0 0.0
        %249 = vmatprep.subr.mxu0 0.0
        %250 = vmatpush1.msra.mxu0 0.0
        %251 = vmatprep.subr.mxu0 0.0
        %252 = vmatpush1.msra.mxu0 0.0
        %253 = vmatprep.subr.mxu0 0.0
        %254 = vmatpush1.msra.mxu0 0.0
        %255 = vmatprep.subr.mxu0 0.0
        %256 = vmatpush1.msra.mxu0 0.0
        %257 = vmatprep.subr.mxu0 0.0
        %258 = vmatpush1.msra.mxu0 0.0
        %259 = vmatprep.subr.mxu0 0.0
        %260 = vmatpush1.msra.mxu0 0.0
        %261 = vmatprep.subr.mxu0 0.0
        %262 = vmatpush1.msra.mxu0 0.0
        %263 = vmatprep.subr.mxu0 0.0
        %264 = vmatpush1.msra.mxu0 0.0
        %265 = vmatprep.subr.mxu0 0.0
        %266 = vmatpush1.msra.mxu0 0.0
        %267 = vmatprep.subr.mxu0 0.0
        %268 = vmatpush1.msra.mxu0 0.0
        %269 = vmatprep.subr.mxu0 0.0
        %270 = vmatpush1.msra.mxu0 0.0
        %271 = vmatprep.subr.mxu0 0.0
        %272 = vmatpush1.msra.mxu0 0.0
        %273 = vmatprep.subr.mxu0 0.0
        %274 = vmatpush1.msra.mxu0 0.0
        %275 = vmatprep.subr.mxu0 0.0
        %276 = vmatpush1.msra.mxu0 0.0
        %277 = vmatprep.subr.mxu0 0.0
        %278 = vmatpush1.msra.mxu0 0.0
        %279 = vmatprep.subr.mxu0 0.0
        %280 = vmatpush1.msra.mxu0 0.0
        %281 = vmatprep.subr.mxu0 0.0
        %282 = vmatpush1.msra.mxu0 0.0
        %283 = vmatprep.subr.mxu0 0.0
        %284 = vmatpush1.msra.mxu0 0.0
        %285 = vmatprep.subr.mxu0 0.0
        %286 = vmatpush1.msra.mxu0 0.0
        %287 = vmatprep.subr.mxu0 0.0
        %288 = vmatpush1.msra.mxu0 0.0
        %289 = vmatprep.subr.mxu0 0.0
        %290 = vmatpush1.msra.mxu0 0.0
        %291 = vmatprep.subr.mxu0 0.0
        %292 = vmatpush1.msra.mxu0 0.0
        %293 = vmatprep.subr.mxu0 0.0
        %294 = vmatpush1.msra.mxu0 0.0
        %295 = vmatprep.subr.mxu0 0.0
        %296 = vmatpush1.msra.mxu0 0.0
        %297 = vmatprep.subr.mxu0 0.0
        %298 = vmatpush1.msra.mxu0 0.0
        %299 = vmatprep.subr.mxu0 0.0
        %300 = vmatpush1.msra.mxu0 0.0
        %301 = vmatprep.mubr.f32.mxu0 0.0
        %302 = vmatmul.mubr.f32.gmra.mrb[0].mxu0 %v232
        %v303 = vpop.f32.mrb[0].mxu0
        %v304 = vadd.f32 0.0, %v303
        %v305 = vpop.f32.mrb[0].mxu0
        %306 = vmatprep.mubr.f32.mxu0 0.0
        %307 = vmatmul.mubr.f32.gmra.mrb[0].mxu0 %v235
        %v308 = vpop.f32.mrb[0].mxu0
        %v309 = vadd.f32 0.0, %v308
        %v310 = vpop.f32.mrb[0].mxu0
        %311 = vdwg.mxu0
        %vm312 = vcmask 261120
        %313 = vst.msk [vmem:[%s195] sm:$0xff] %vm312, %v304
        %314 = vst.msk [vmem:[%s195 + $0x8] sm:$0xff] %vm312, %v309
        %s315 = sand.u32 %s82, 1
        %s316 = scalar_lea.sflag [#allocation4], %s315
        %s317 = sand.u32 %s82, 1
        %s318 = smul.addr %s317, 16
        %s319 = scalar_lea.vmem [#allocation7], %s318
        // Predicated region
        $region37: #{tpu_custom_call.1} parent=27 // pred_check
          %p320 = pneg %p92
        $region38: #{tpu_custom_call.1} parent=27 // pred_check_branch
          %322 = sbr.rel (%p320) target = $region40
        $region39: #{tpu_custom_call.1} parent=27 // pred_region
          %s324 = ssub.s32 256, 256
          %325 = vsyncadd %s316, %s324
          %s326 = smul.addr %s22, 2
          %s327 = smul.addr %s326, 128
          %s328 = scalar_lea.hbm %s2, %s327
          %s329 = sshll.u32 %s319, 4
          %s330 = int_to_ptr.vmem [resolvable:$true] %s329
          %335 = dma.vmem_to_hbm [thread:$0]  %s330, 256, %s328, %s316, 128, 128, 8
        $region40: #{tpu_custom_call.1} parent=27 // pred_fallthru
          _
      $region28: #{tpu_custom_call.1} parent=5 // pred_fallthru
        _
      %p336 = scmp.le.s32.totalorder 2, %s17
      // Predicated region
      $region41: #{tpu_custom_call.1} parent=5 // pred_check
        %p337 = pneg %p336
      $region42: #{tpu_custom_call.1} parent=5 // pred_check_branch
        %339 = sbr.rel (%p337) target = $region44
      $region43: #{tpu_custom_call.1} parent=5 // pred_region
        %s340 = ssub.s32 %s17, 2
        // Predicated region
        $region45: #{tpu_custom_call.1} parent=43 // pred_check
          %p341 = pneg %p98
        $region46: #{tpu_custom_call.1} parent=43 // pred_check_branch
          %343 = sbr.rel (%p341) target = $region48
        $region47: #{tpu_custom_call.1} parent=43 // pred_region
          %s344 = sand.u32 %s83, 1
          %s345 = scalar_lea.sflag [#allocation4], %s344
          %s346 = sand.u32 %s83, 1
          %s347 = smul.addr %s346, 16
          %s348 = scalar_lea.vmem [#allocation7], %s347
          %349 = dma.done %s345, 256
        $region48: #{tpu_custom_call.1} parent=43 // pred_fallthru
          _
      $region44: #{tpu_custom_call.1} parent=5 // pred_fallthru
        _
    $region6: #{tpu_custom_call.1} parent=1 // loop_footer
      %s21 = sadd.s32 1, %s17
    $region7: #{tpu_custom_call.1} parent=1 // loop_footer_branch
      %16 = sbr.rel target = $region3
    $region8: #{tpu_custom_call.1} parent=1 // loop_exit
      _
    %350 = vsyncpa [#allocation3], 1
    %s351 = scalar_lea.sflag [#allocation3], 1
    %352 = vsyncpa %s351, 1
    %353 = vsyncpa [#allocation6], 1
    %s354 = scalar_lea.sflag [#allocation6], 1
    %355 = vsyncpa %s354, 1
    %356 = vsyncpa [#allocation4], 1
    %s357 = scalar_lea.sflag [#allocation4], 1
    %358 = vsyncpa %s357, 1

</llo_original>
